<compile_context>
chip_gen: v7x
topology: tpu7x:2x2x1
jax: 0.10.0
libtpu: 0.0.40
codegen_flags: <defaults>
</compile_context>

<pallas_src>
import jax
import jax.numpy as jnp
from jax.experimental import pallas as pl
from jax.experimental.pallas import tpu as pltpu


LANE = 128            # TPU vreg lane width: hidden dim padded to a multiple of this.
MAX_BATCH_TILE = 2048  # rows per grid step; a (2048, 128) f32 activation tile is only 1 MiB.


def _round_up(x, m):
    return ((x + m - 1) // m) * m


def _vmem_cap_bytes():
    """Generation-aware VMEM budget (~75% of physical; conservative fallback = v7x-safe)."""
    try:
        return int(pltpu.get_tpu_info().vmem_capacity_bytes) * 3 // 4
    except Exception:
        return 48 * 1024 * 1024


def _pick_batch_tile(batch):
    if batch <= 64:
        return batch  # one block; block dim == full array dim so any size is valid
    # >=2 grid blocks so v7x's two TensorCores both get work (no-op perf-wise on v5e/v6e).
    half = -(-batch // 2)
    return min(MAX_BATCH_TILE, _round_up(half, 8))


# ---------------------------------------------------------------------------
# Kernel: 4 Linear layers on the MXU (f32 accumulation) + ReLU (VPU) / Tanh (EUP).
# ---------------------------------------------------------------------------
def critic_kernel(x_ref,
                  w1_ref, b1_ref,
                  w2_ref, b2_ref,
                  w3_ref, b3_ref,
                  w4_ref, b4_ref,
                  o_ref):
    cdt = w2_ref.dtype  # matmul operand dtype (bf16 or f32); accumulation stays f32.

    h = jnp.dot(x_ref[...].astype(cdt), w1_ref[...],
                preferred_element_type=jnp.float32) + b1_ref[...]
    h = jnp.maximum(h, 0.0)                                            # ReLU (f32 VPU)

    h = jnp.dot(h.astype(cdt), w2_ref[...],
                preferred_element_type=jnp.float32) + b2_ref[...]
    h = jnp.maximum(h, 0.0)

    h = jnp.dot(h.astype(cdt), w3_ref[...],
                preferred_element_type=jnp.float32) + b3_ref[...]
    h = jnp.maximum(h, 0.0)

    h = jnp.dot(h.astype(cdt), w4_ref[...],
                preferred_element_type=jnp.float32) + b4_ref[...]
    o_ref[...] = jnp.tanh(h).astype(o_ref.dtype)                       # Tanh (f32 EUP)


# ---------------------------------------------------------------------------
# Parameter preparation (once, outside the training step)
# ---------------------------------------------------------------------------
def prepare_params_for_kernel(params, compute_dtype=jnp.bfloat16):
    """Accepts one critic param tuple ((w1,b1),...,(w4,b4)) or a list of E such tuples
    (fused twin critics / ensembles).  Stacks weights along a leading ensemble axis, pads
    the hidden dim to a multiple of 128 (zero columns stay exact zeros through bias+ReLU),
    keeps the output dim un-padded, and casts matmul operands to `compute_dtype`.
    Biases stay f32 and are added to the f32 MXU accumulator."""
    single = hasattr(params[0][0], "ndim")          # (w1, b1) pair -> single critic
    plist = [params] if single else list(params)

    w1_0, w4_0 = plist[0][0][0], plist[0][3][0]
    n_input, n_hidden = w1_0.shape
    n_output = w4_0.shape[1]
    hp = _round_up(n_hidden, LANE)

    # v7x-aware fallback: resident f32 weights (single-buffered, per member) must fit VMEM.
    resident_f32 = (n_input * hp + 2 * hp * hp + hp * _round_up(n_output, LANE)) * 4
    if jnp.dtype(compute_dtype) == jnp.dtype(jnp.float32) and resident_f32 > int(0.6 * _vmem_cap_bytes()):
        compute_dtype = jnp.bfloat16
    # TODO(synk): if even bf16 resident weights overflow VMEM (very large n_hidden), tile
    # W2/W3 over a hidden-dim grid axis instead of keeping all weights resident.

    def pad2(a, rows, cols):
        return jnp.pad(a, ((0, rows - a.shape[0]), (0, cols - a.shape[1])))

    w1 = jnp.stack([pad2(p[0][0], n_input, hp) for p in plist]).astype(compute_dtype)
    b1 = jnp.stack([pad2(p[0][1], 1, hp) for p in plist]).astype(jnp.float32)
    w2 = jnp.stack([pad2(p[1][0], hp, hp) for p in plist]).astype(compute_dtype)
    b2 = jnp.stack([pad2(p[1][1], 1, hp) for p in plist]).astype(jnp.float32)
    w3 = jnp.stack([pad2(p[2][0], hp, hp) for p in plist]).astype(compute_dtype)
    b3 = jnp.stack([pad2(p[2][1], 1, hp) for p in plist]).astype(jnp.float32)
    w4 = jnp.stack([pad2(p[3][0], hp, n_output) for p in plist]).astype(compute_dtype)
    b4 = jnp.stack([pad2(p[3][1], 1, n_output) for p in plist]).astype(jnp.float32)

    return {"w1": w1, "b1": b1, "w2": w2, "b2": b2, "w3": w3, "b3": b3,
            "w4": w4, "b4": b4, "n_output": n_output, "squeeze": single}


# ---------------------------------------------------------------------------
# Forward wrapper
# ---------------------------------------------------------------------------
def _vmem_estimate_bytes(tb, din, hp, n_output, w_itemsize):
    din_l = _round_up(din, LANE)
    out_l = _round_up(n_output, LANE)
    weight_bytes = (din * hp + 2 * hp * hp + hp * out_l) * w_itemsize  # single-buffered (Buffered(1))
    bias_bytes = (3 * hp + out_l) * 4
    io_bytes = 2 * tb * din_l * 4 + 2 * tb * out_l * 4                 # double-buffered x / out tiles
    interm_bytes = 2 * tb * hp * 4                                     # live f32 hidden activations
    return weight_bytes + bias_bytes + io_bytes + interm_bytes


def critic_forward(state, action, kp):
    """Runs the Pallas critic kernel.  Returns (batch, n_output) for a single critic or
    (E, batch, n_output) for a fused ensemble / twin-critic parameter set."""
    x = jnp.concatenate([state, action], axis=1)        # layer-1 fused into one MXU matmul
    batch, din = x.shape
    E, din_w, hp = kp["w1"].shape
    n_output = kp["n_output"]
    assert din == din_w, "state_dim + action_dim must match the prepared W1"

    tb = _pick_batch_tile(batch)
    grid = (E, pl.cdiv(batch, tb))                      # batch tiles innermost: weights DMA'd once per member

    def resident(rows, cols):
        # Constant block index across batch tiles -> VMEM-resident; single-buffered.
        return pl.BlockSpec((None, rows, cols), lambda e, i: (e, 0, 0),
                            pipeline_mode=pl.Buffered(1))

    in_specs = [
        pl.BlockSpec((tb, din), lambda e, i: (i, 0)),   # activation tile (double-buffered)
        resident(din, hp),                              # W1 (unsplit: cat folded into the wrapper)
        resident(1, hp),                                # b1
        resident(hp, hp),                               # W2
        resident(1, hp),                                # b2
        resident(hp, hp),                               # W3
        resident(1, hp),                                # b3
        resident(hp, n_output),                         # W4 (output dim un-padded)
        resident(1, n_output),                          # b4
    ]
    # Un-padded output: full-extent last dim -> no 32x write amplification, no wrapper slice.
    out_spec = pl.BlockSpec((None, tb, n_output), lambda e, i: (e, i, 0))

    est = _vmem_estimate_bytes(tb, din, hp, n_output, kp["w2"].dtype.itemsize)
    vmem_limit = int(min(_vmem_cap_bytes(), max(2 * est, 32 * 1024 * 1024)))

    param_bytes = sum(int(kp[k].size) * kp[k].dtype.itemsize
                      for k in ("w1", "b1", "w2", "b2", "w3", "b3", "w4", "b4"))
    cost = pl.CostEstimate(
        flops=int(2 * E * batch * (din * hp + 2 * hp * hp + hp * n_output)),
        transcendentals=int(E * batch * n_output),
        bytes_accessed=int(x.size * x.dtype.itemsize + param_bytes + E * batch * n_output * 4),
    )

    out = pl.pallas_call(
        critic_kernel,
        out_shape=jax.ShapeDtypeStruct((E, batch, n_output), jnp.float32),
        grid=grid,
        in_specs=in_specs,
        out_specs=out_spec,
        compiler_params=pltpu.CompilerParams(
            dimension_semantics=("parallel", "parallel"),  # ensemble x batch-tiles, both independent
            vmem_limit_bytes=vmem_limit,
        ),
        cost_estimate=cost,
    )(x, kp["w1"], kp["b1"], kp["w2"], kp["b2"], kp["w3"], kp["b3"], kp["w4"], kp["b4"])

    return out[0] if kp["squeeze"] else out


# ---------------------------------------------------------------------------
# Init (matches nn.init.xavier_uniform_(gain=1) + zero bias of the PyTorch module)
# ---------------------------------------------------------------------------
def xavier_uniform(key, fan_in, fan_out, gain=1.0):
    bound = gain * jnp.sqrt(6.0 / (fan_in + fan_out))
    return jax.random.uniform(key, (fan_in, fan_out), jnp.float32, -bound, bound)


def init_critic_params(key, n_input, n_output, n_hidden):
    k1, k2, k3, k4 = jax.random.split(key, 4)
    return (
        (xavier_uniform(k1, n_input, n_hidden), jnp.zeros((1, n_hidden), jnp.float32)),
        (xavier_uniform(k2, n_hidden, n_hidden), jnp.zeros((1, n_hidden), jnp.float32)),
        (xavier_uniform(k3, n_hidden, n_hidden), jnp.zeros((1, n_hidden), jnp.float32)),
        (xavier_uniform(k4, n_hidden, n_output), jnp.zeros((1, n_output), jnp.float32)),
    )


def critic_reference(state, action, params):
    """Plain-JAX f32 reference (mirrors the PyTorch forward exactly)."""
    x = jnp.concatenate([state, action], axis=1)
    (w1, b1), (w2, b2), (w3, b3), (w4, b4) = params
    h = jnp.maximum(x @ w1 + b1, 0.0)
    h = jnp.maximum(h @ w2 + b2, 0.0)
    h = jnp.maximum(h @ w3 + b3, 0.0)
    return jnp.tanh(h @ w4 + b4)


if __name__ == "__main__":
    key = jax.random.PRNGKey(0)
    k_state, k_action, k_p1, k_p2, k_big = jax.random.split(key, 5)

    batch, state_dim, action_dim = 2, 6, 2
    n_input = state_dim + action_dim   # 8
    n_hidden, n_output = 32, 4

    state = jax.random.normal(k_state, (batch, state_dim), jnp.float32)
    action = jax.random.normal(k_action, (batch, action_dim), jnp.float32)
    params1 = init_critic_params(k_p1, n_input, n_output, n_hidden)
    params2 = init_critic_params(k_p2, n_input, n_output, n_hidden)
    ref1 = critic_reference(state, action, params1)
    ref2 = critic_reference(state, action, params2)

    # Exact-semantics path: f32 MXU operands, tight tolerance.
    kp_f32 = prepare_params_for_kernel(params1, compute_dtype=jnp.float32)
    out_f32 = jax.block_until_ready(critic_forward(state, action, kp_f32))
    assert out_f32.shape == (batch, n_output)
    assert jnp.allclose(out_f32, ref1, atol=1e-5, rtol=1e-5), "f32 Pallas output mismatch"

    # Default path: bf16 MXU operands, f32 accumulation + f32 ReLU/Tanh -> looser tolerance.
    kp_bf16 = prepare_params_for_kernel(params1)
    out_bf16 = jax.block_until_ready(critic_forward(state, action, kp_bf16))
    assert out_bf16.shape == (batch, n_output)
    assert jnp.allclose(out_bf16, ref1, atol=3e-2, rtol=3e-2), "bf16 Pallas output mismatch"

    # Fused twin critics (one pallas_call, ensemble grid axis E=2).
    kp_twin = prepare_params_for_kernel([params1, params2], compute_dtype=jnp.float32)
    out_twin = jax.block_until_ready(critic_forward(state, action, kp_twin))
    assert out_twin.shape == (2, batch, n_output)
    assert jnp.allclose(out_twin[0], ref1, atol=1e-5, rtol=1e-5), "twin critic Q1 mismatch"
    assert jnp.allclose(out_twin[1], ref2, atol=1e-5, rtol=1e-5), "twin critic Q2 mismatch"

    # Larger ragged batch: exercises the >=2-block grid and the masked last output tile.
    big_b = 100
    s_big = jax.random.normal(jax.random.fold_in(k_big, 0), (big_b, state_dim), jnp.float32)
    a_big = jax.random.normal(jax.random.fold_in(k_big, 1), (big_b, action_dim), jnp.float32)
    out_big = jax.block_until_ready(critic_forward(s_big, a_big, kp_f32))
    assert out_big.shape == (big_b, n_output)
    assert jnp.allclose(out_big, critic_reference(s_big, a_big, params1),
                        atol=1e-5, rtol=1e-5), "large-batch Pallas output mismatch"

    print("KERNEL_OK")
</pallas_src>

<mosaic_0001>
module attributes {stable_mosaic.version = 11 : i64} {
  func.func @critic_kernel(%arg0: i32, %arg1: i32, %arg2: memref<2x8xf32, #tpu.memory_space<vmem>>, %arg3: memref<1x8x128xf32, #tpu.memory_space<vmem>>, %arg4: memref<1x1x128xf32, #tpu.memory_space<vmem>>, %arg5: memref<1x128x128xf32, #tpu.memory_space<vmem>>, %arg6: memref<1x1x128xf32, #tpu.memory_space<vmem>>, %arg7: memref<1x128x128xf32, #tpu.memory_space<vmem>>, %arg8: memref<1x1x128xf32, #tpu.memory_space<vmem>>, %arg9: memref<1x128x4xf32, #tpu.memory_space<vmem>>, %arg10: memref<1x1x4xf32, #tpu.memory_space<vmem>>, %arg11: memref<1x2x4xf32, #tpu.memory_space<vmem>>) attributes {dimension_semantics = [#tpu.dimension_semantics<parallel>, #tpu.dimension_semantics<parallel>], iteration_bounds = array<i64: 1, 1>, scalar_prefetch = 0 : i64, scratch_operands = 0 : i64, tpu.core_type = #tpu.core_type<tc>, window_params = [{transform_indices = @transform_0, window_bounds = array<i64: 2, 8>}, {pipeline_mode = #tpu.pipeline_mode<synchronous>, transform_indices = @transform_1, window_bounds = array<i64: 1, 8, 128>}, {pipeline_mode = #tpu.pipeline_mode<synchronous>, transform_indices = @transform_2, window_bounds = array<i64: 1, 1, 128>}, {pipeline_mode = #tpu.pipeline_mode<synchronous>, transform_indices = @transform_3, window_bounds = array<i64: 1, 128, 128>}, {pipeline_mode = #tpu.pipeline_mode<synchronous>, transform_indices = @transform_4, window_bounds = array<i64: 1, 1, 128>}, {pipeline_mode = #tpu.pipeline_mode<synchronous>, transform_indices = @transform_5, window_bounds = array<i64: 1, 128, 128>}, {pipeline_mode = #tpu.pipeline_mode<synchronous>, transform_indices = @transform_6, window_bounds = array<i64: 1, 1, 128>}, {pipeline_mode = #tpu.pipeline_mode<synchronous>, transform_indices = @transform_7, window_bounds = array<i64: 1, 128, 4>}, {pipeline_mode = #tpu.pipeline_mode<synchronous>, transform_indices = @transform_8, window_bounds = array<i64: 1, 1, 4>}, {transform_indices = @transform_9, window_bounds = array<i64: 1, 2, 4>}]} {
    %c0 = arith.constant 0 : index
    %c0_0 = arith.constant 0 : index
    %0 = vector.load %arg2[%c0, %c0_0] : memref<2x8xf32, #tpu.memory_space<vmem>>, vector<2x8xf32>
    %c0_1 = arith.constant 0 : index
    %c0_2 = arith.constant 0 : index
    %c0_3 = arith.constant 0 : index
    %1 = vector.load %arg3[%c0_1, %c0_2, %c0_3] : memref<1x8x128xf32, #tpu.memory_space<vmem>>, vector<1x8x128xf32>
    %2 = vector.shape_cast %1 : vector<1x8x128xf32> to vector<8x128xf32>
    %cst = arith.constant dense<0.000000e+00> : vector<2x128xf32>
    %3 = tpu.matmul %0, %2, %cst {dimension_numbers = #tpu.dot_dimension_numbers<[1], [0], [0], [1], [0, 0, 1, 1], [], []>} : vector<2x8xf32>, vector<8x128xf32>, vector<2x128xf32> -> vector<2x128xf32>
    %c0_4 = arith.constant 0 : index
    %c0_5 = arith.constant 0 : index
    %c0_6 = arith.constant 0 : index
    %4 = vector.load %arg4[%c0_4, %c0_5, %c0_6] : memref<1x1x128xf32, #tpu.memory_space<vmem>>, vector<1x1x128xf32>
    %5 = vector.shape_cast %4 : vector<1x1x128xf32> to vector<1x128xf32>
    %6 = vector.broadcast %5 : vector<1x128xf32> to vector<2x128xf32>
    %7 = arith.addf %3, %6 : vector<2x128xf32>
    %cst_7 = arith.constant 0.000000e+00 : f32
    %8 = vector.broadcast %cst_7 : f32 to vector<2x128xf32>
    %9 = arith.maximumf %7, %8 : vector<2x128xf32>
    %c0_8 = arith.constant 0 : index
    %c0_9 = arith.constant 0 : index
    %c0_10 = arith.constant 0 : index
    %10 = vector.load %arg5[%c0_8, %c0_9, %c0_10] : memref<1x128x128xf32, #tpu.memory_space<vmem>>, vector<1x128x128xf32>
    %11 = vector.shape_cast %10 : vector<1x128x128xf32> to vector<128x128xf32>
    %cst_11 = arith.constant dense<0.000000e+00> : vector<2x128xf32>
    %12 = tpu.matmul %9, %11, %cst_11 {dimension_numbers = #tpu.dot_dimension_numbers<[1], [0], [0], [1], [0, 0, 1, 1], [], []>} : vector<2x128xf32>, vector<128x128xf32>, vector<2x128xf32> -> vector<2x128xf32>
    %c0_12 = arith.constant 0 : index
    %c0_13 = arith.constant 0 : index
    %c0_14 = arith.constant 0 : index
    %13 = vector.load %arg6[%c0_12, %c0_13, %c0_14] : memref<1x1x128xf32, #tpu.memory_space<vmem>>, vector<1x1x128xf32>
    %14 = vector.shape_cast %13 : vector<1x1x128xf32> to vector<1x128xf32>
    %15 = vector.broadcast %14 : vector<1x128xf32> to vector<2x128xf32>
    %16 = arith.addf %12, %15 : vector<2x128xf32>
    %cst_15 = arith.constant 0.000000e+00 : f32
    %17 = vector.broadcast %cst_15 : f32 to vector<2x128xf32>
    %18 = arith.maximumf %16, %17 : vector<2x128xf32>
    %c0_16 = arith.constant 0 : index
    %c0_17 = arith.constant 0 : index
    %c0_18 = arith.constant 0 : index
    %19 = vector.load %arg7[%c0_16, %c0_17, %c0_18] : memref<1x128x128xf32, #tpu.memory_space<vmem>>, vector<1x128x128xf32>
    %20 = vector.shape_cast %19 : vector<1x128x128xf32> to vector<128x128xf32>
    %cst_19 = arith.constant dense<0.000000e+00> : vector<2x128xf32>
    %21 = tpu.matmul %18, %20, %cst_19 {dimension_numbers = #tpu.dot_dimension_numbers<[1], [0], [0], [1], [0, 0, 1, 1], [], []>} : vector<2x128xf32>, vector<128x128xf32>, vector<2x128xf32> -> vector<2x128xf32>
    %c0_20 = arith.constant 0 : index
    %c0_21 = arith.constant 0 : index
    %c0_22 = arith.constant 0 : index
    %22 = vector.load %arg8[%c0_20, %c0_21, %c0_22] : memref<1x1x128xf32, #tpu.memory_space<vmem>>, vector<1x1x128xf32>
    %23 = vector.shape_cast %22 : vector<1x1x128xf32> to vector<1x128xf32>
    %24 = vector.broadcast %23 : vector<1x128xf32> to vector<2x128xf32>
    %25 = arith.addf %21, %24 : vector<2x128xf32>
    %cst_23 = arith.constant 0.000000e+00 : f32
    %26 = vector.broadcast %cst_23 : f32 to vector<2x128xf32>
    %27 = arith.maximumf %25, %26 : vector<2x128xf32>
    %c0_24 = arith.constant 0 : index
    %c0_25 = arith.constant 0 : index
    %c0_26 = arith.constant 0 : index
    %28 = vector.load %arg9[%c0_24, %c0_25, %c0_26] : memref<1x128x4xf32, #tpu.memory_space<vmem>>, vector<1x128x4xf32>
    %29 = vector.shape_cast %28 : vector<1x128x4xf32> to vector<128x4xf32>
    %cst_27 = arith.constant dense<0.000000e+00> : vector<2x4xf32>
    %30 = tpu.matmul %27, %29, %cst_27 {dimension_numbers = #tpu.dot_dimension_numbers<[1], [0], [0], [1], [0, 0, 1, 1], [], []>} : vector<2x128xf32>, vector<128x4xf32>, vector<2x4xf32> -> vector<2x4xf32>
    %c0_28 = arith.constant 0 : index
    %c0_29 = arith.constant 0 : index
    %c0_30 = arith.constant 0 : index
    %31 = vector.load %arg10[%c0_28, %c0_29, %c0_30] : memref<1x1x4xf32, #tpu.memory_space<vmem>>, vector<1x1x4xf32>
    %32 = vector.shape_cast %31 : vector<1x1x4xf32> to vector<1x4xf32>
    %33 = vector.broadcast %32 : vector<1x4xf32> to vector<2x4xf32>
    %34 = arith.addf %30, %33 : vector<2x4xf32>
    %35 = math.tanh %34 : vector<2x4xf32>
    %c0_31 = arith.constant 0 : index
    %c0_32 = arith.constant 0 : index
    %c0_33 = arith.constant 0 : index
    %36 = vector.load %arg11[%c0_31, %c0_32, %c0_33] : memref<1x2x4xf32, #tpu.memory_space<vmem>>, vector<1x2x4xf32>
    %37 = vector.shape_cast %36 : vector<1x2x4xf32> to vector<2x4xf32>
    %38 = vector.shape_cast %35 : vector<2x4xf32> to vector<1x2x4xf32>
    tpu.vector_store %arg11[%c0_31, %c0_32, %c0_33], %38 {strides = array<i32>} : memref<1x2x4xf32, #tpu.memory_space<vmem>>, vector<1x2x4xf32>,
    return
  }
  func.func @transform_0(%arg0: i32, %arg1: i32) -> (i32, i32) {
    %c0_i32 = arith.constant 0 : i32
    %c0_i32_0 = arith.constant 0 : i32
    return %arg1, %c0_i32 : i32, i32
  }
  func.func @transform_1(%arg0: i32, %arg1: i32) -> (i32, i32, i32) {
    %c0_i32 = arith.constant 0 : i32
    %c0_i32_0 = arith.constant 0 : i32
    %c0_i32_1 = arith.constant 0 : i32
    return %arg0, %c0_i32, %c0_i32_0 : i32, i32, i32
  }
  func.func @transform_2(%arg0: i32, %arg1: i32) -> (i32, i32, i32) {
    %c0_i32 = arith.constant 0 : i32
    %c0_i32_0 = arith.constant 0 : i32
    %c0_i32_1 = arith.constant 0 : i32
    return %arg0, %c0_i32, %c0_i32_0 : i32, i32, i32
  }
  func.func @transform_3(%arg0: i32, %arg1: i32) -> (i32, i32, i32) {
    %c0_i32 = arith.constant 0 : i32
    %c0_i32_0 = arith.constant 0 : i32
    %c0_i32_1 = arith.constant 0 : i32
    return %arg0, %c0_i32, %c0_i32_0 : i32, i32, i32
  }
  func.func @transform_4(%arg0: i32, %arg1: i32) -> (i32, i32, i32) {
    %c0_i32 = arith.constant 0 : i32
    %c0_i32_0 = arith.constant 0 : i32
    %c0_i32_1 = arith.constant 0 : i32
    return %arg0, %c0_i32, %c0_i32_0 : i32, i32, i32
  }
  func.func @transform_5(%arg0: i32, %arg1: i32) -> (i32, i32, i32) {
    %c0_i32 = arith.constant 0 : i32
    %c0_i32_0 = arith.constant 0 : i32
    %c0_i32_1 = arith.constant 0 : i32
    return %arg0, %c0_i32, %c0_i32_0 : i32, i32, i32
  }
  func.func @transform_6(%arg0: i32, %arg1: i32) -> (i32, i32, i32) {
    %c0_i32 = arith.constant 0 : i32
    %c0_i32_0 = arith.constant 0 : i32
    %c0_i32_1 = arith.constant 0 : i32
    return %arg0, %c0_i32, %c0_i32_0 : i32, i32, i32
  }
  func.func @transform_7(%arg0: i32, %arg1: i32) -> (i32, i32, i32) {
    %c0_i32 = arith.constant 0 : i32
    %c0_i32_0 = arith.constant 0 : i32
    %c0_i32_1 = arith.constant 0 : i32
    return %arg0, %c0_i32, %c0_i32_0 : i32, i32, i32
  }
  func.func @transform_8(%arg0: i32, %arg1: i32) -> (i32, i32, i32) {
    %c0_i32 = arith.constant 0 : i32
    %c0_i32_0 = arith.constant 0 : i32
    %c0_i32_1 = arith.constant 0 : i32
    return %arg0, %c0_i32, %c0_i32_0 : i32, i32, i32
  }
  func.func @transform_9(%arg0: i32, %arg1: i32) -> (i32, i32, i32) {
    %c0_i32 = arith.constant 0 : i32
    %c0_i32_0 = arith.constant 0 : i32
    return %arg0, %arg1, %c0_i32 : i32, i32, i32
  }
}

</mosaic_0001>

<llo_original>
// kernel: tpu_custom_call.1
$region0: #{tpu_custom_call.1}
  #allocation0 [shape = 'u32[]', space=smem, size = 0x4, offset = 0x4, fixed_abs, tag = 'smem constant byte address 0x4 - core index']
  #allocation1 [shape = 'u32[144,128]{1,0:T(1,128)}', space=vmem, size = 0x12000, scoped, tag = 'internal scratch']
  %s0 = inlined_call_operand.vmem [shape: f32[2,8], index: 0, kind: input, shape index: {}]
  %s1 = inlined_call_operand.vmem [shape: f32[1,8,128], index: 1, kind: input, shape index: {}]
  %s2 = inlined_call_operand.vmem [shape: f32[1,1,128], index: 2, kind: input, shape index: {}]
  %s3 = inlined_call_operand.vmem [shape: f32[1,128,128], index: 3, kind: input, shape index: {}]
  %s4 = inlined_call_operand.vmem [shape: f32[1,1,128], index: 4, kind: input, shape index: {}]
  %s5 = inlined_call_operand.hbm [shape: f32[1,128,128], index: 5, kind: input, shape index: {}]
  %s6 = inlined_call_operand.vmem [shape: f32[1,1,128], index: 6, kind: input, shape index: {}]
  %s7 = inlined_call_operand.vmem [shape: f32[1,128,4], index: 7, kind: input, shape index: {}]
  %s8 = inlined_call_operand.vmem [shape: f32[1,1,4], index: 8, kind: input, shape index: {}]
  %s9 = inlined_call_operand.hbm [shape: f32[1,2,4], index: 9, kind: output, shape index: {}]
  %s10 = sld [smem:[#allocation0]]
  $region50: #{tpu_custom_call.1} parent=0
    _
  %s12 = ssub.s32 1, %s10
  %s13 = scalar_select 0, %s12, %s10
  $region1: #{tpu_custom_call.1} parent=0
    #allocation2 [shape = 'u8[65536]{0}', space=vmem, size = 0x10000, scoped, tag = 'input window, operand 5, single buffered']
    #allocation3 [shape = 's32[1]{0}', space=sflag, size = 0x4, scoped, tag = 'scoped memory for tpu_custom_call.1']
    #allocation4 [shape = 's32[1]{0}', space=sflag, size = 0x4, scoped, tag = 'scoped memory for tpu_custom_call.1']
    #allocation5 [shape = 'u8[1024]{0}', space=vmem, size = 0x400, scoped, tag = 'output window, operand 0, single buffered']
    %14 = vsyncpa [#allocation3], 0
    %15 = vsyncpa [#allocation4], 0
    // Predicated region
    $region2: #{tpu_custom_call.1} parent=1 // pred_check
      _
    $region3: #{tpu_custom_call.1} parent=1 // pred_check_branch
      %17 = sbr.rel (0) target = $region5
    $region4: #{tpu_custom_call.1} parent=1 // pred_region
      _
    $region5: #{tpu_custom_call.1} parent=1 // pred_fallthru
      _
    // Predicated region
    $region6: #{tpu_custom_call.1} parent=1 // pred_check
      _
    $region7: #{tpu_custom_call.1} parent=1 // pred_check_branch
      %19 = sbr.rel (0) target = $region9
    $region8: #{tpu_custom_call.1} parent=1 // pred_region
      _
    $region9: #{tpu_custom_call.1} parent=1 // pred_fallthru
      _
    // Predicated region
    $region10: #{tpu_custom_call.1} parent=1 // pred_check
      _
    $region11: #{tpu_custom_call.1} parent=1 // pred_check_branch
      %21 = sbr.rel (0) target = $region13
    $region12: #{tpu_custom_call.1} parent=1 // pred_region
      _
    $region13: #{tpu_custom_call.1} parent=1 // pred_fallthru
      _
    // Predicated region
    $region14: #{tpu_custom_call.1} parent=1 // pred_check
      _
    $region15: #{tpu_custom_call.1} parent=1 // pred_check_branch
      %23 = sbr.rel (0) target = $region17
    $region16: #{tpu_custom_call.1} parent=1 // pred_region
      _
    $region17: #{tpu_custom_call.1} parent=1 // pred_fallthru
      _
    // Predicated region
    $region18: #{tpu_custom_call.1} parent=1 // pred_check
      _
    $region19: #{tpu_custom_call.1} parent=1 // pred_check_branch
      %25 = sbr.rel (0) target = $region21
    $region20: #{tpu_custom_call.1} parent=1 // pred_region
      _
    $region21: #{tpu_custom_call.1} parent=1 // pred_fallthru
      _
    // Predicated region
    $region22: #{tpu_custom_call.1} parent=1 // pred_check
      _
    $region23: #{tpu_custom_call.1} parent=1 // pred_check_branch
      %27 = sbr.rel (0) target = $region25
    $region24: #{tpu_custom_call.1} parent=1 // pred_region
      %s29 = ssub.s32 2048, 2048
      %30 = vsyncadd [#allocation3], %s29
      %s31 = sshll.u32 [#allocation2], 4
      %s32 = int_to_ptr.vmem [resolvable:$true] %s31
      %37 = dma.hbm_to_vmem [thread:$0]  %s5, 2048, %s32, [#allocation3], 128, 128, 8
    $region25: #{tpu_custom_call.1} parent=1 // pred_fallthru
      _
    // Predicated region
    $region26: #{tpu_custom_call.1} parent=1 // pred_check
      _
    $region27: #{tpu_custom_call.1} parent=1 // pred_check_branch
      %39 = sbr.rel (0) target = $region29
    $region28: #{tpu_custom_call.1} parent=1 // pred_region
      _
    $region29: #{tpu_custom_call.1} parent=1 // pred_fallthru
      _
    // Predicated region
    $region30: #{tpu_custom_call.1} parent=1 // pred_check
      _
    $region31: #{tpu_custom_call.1} parent=1 // pred_check_branch
      %41 = sbr.rel (0) target = $region33
    $region32: #{tpu_custom_call.1} parent=1 // pred_region
      _
    $region33: #{tpu_custom_call.1} parent=1 // pred_fallthru
      _
    // Predicated region
    $region34: #{tpu_custom_call.1} parent=1 // pred_check
      _
    $region35: #{tpu_custom_call.1} parent=1 // pred_check_branch
      %43 = sbr.rel (0) target = $region37
    $region36: #{tpu_custom_call.1} parent=1 // pred_region
      _
    $region37: #{tpu_custom_call.1} parent=1 // pred_fallthru
      _
    // Predicated region
    $region38: #{tpu_custom_call.1} parent=1 // pred_check
      _
    $region39: #{tpu_custom_call.1} parent=1 // pred_check_branch
      %45 = sbr.rel (0) target = $region41
    $region40: #{tpu_custom_call.1} parent=1 // pred_region
      %46 = dma.done [#allocation3], 2048
    $region41: #{tpu_custom_call.1} parent=1 // pred_fallthru
      _
    %v47 = vld [vmem:[%s0] sm:$0x3]
    %v48 = vld [vmem:[%s1] sm:$0xff]
    %v49 = vld [vmem:[%s2] sm:$0x1]
    %v51 = vlaneseq
    %v52 = vshrl.u32 %v51, 7
    %v53 = vsub.s32 0, %v52
    %v54 = vrot.slane %v49, %v53
    %vm56 = vcmask 64512
    %v58 = vsel %vm56, %v47, 0
    %60 = vmatprep.subr.mxu0 0.0
    %61 = vmatpush1.msra.mxu0 %v48
    %62 = vmatprep.subr.mxu0 0.0
    %63 = vmatpush1.msra.mxu0 0.0
    %64 = vmatprep.subr.mxu0 0.0
    %65 = vmatpush1.msra.mxu0 0.0
    %66 = vmatprep.subr.mxu0 0.0
    %67 = vmatpush1.msra.mxu0 0.0
    %68 = vmatprep.subr.mxu0 0.0
    %69 = vmatpush1.msra.mxu0 0.0
    %70 = vmatprep.subr.mxu0 0.0
    %71 = vmatpush1.msra.mxu0 0.0
    %72 = vmatprep.subr.mxu0 0.0
    %73 = vmatpush1.msra.mxu0 0.0
    %74 = vmatprep.subr.mxu0 0.0
    %75 = vmatpush1.msra.mxu0 0.0
    %76 = vmatprep.subr.mxu0 0.0
    %77 = vmatpush1.msra.mxu0 0.0
    %78 = vmatprep.subr.mxu0 0.0
    %79 = vmatpush1.msra.mxu0 0.0
    %80 = vmatprep.subr.mxu0 0.0
    %81 = vmatpush1.msra.mxu0 0.0
    %82 = vmatprep.subr.mxu0 0.0
    %83 = vmatpush1.msra.mxu0 0.0
    %84 = vmatprep.subr.mxu0 0.0
    %85 = vmatpush1.msra.mxu0 0.0
    %86 = vmatprep.subr.mxu0 0.0
    %87 = vmatpush1.msra.mxu0 0.0
    %88 = vmatprep.subr.mxu0 0.0
    %89 = vmatpush1.msra.mxu0 0.0
    %90 = vmatprep.subr.mxu0 0.0
    %91 = vmatpush1.msra.mxu0 0.0
    %92 = vmatprep.subr.mxu0 0.0
    %93 = vmatpush1.msra.mxu0 0.0
    %94 = vmatprep.subr.mxu0 0.0
    %95 = vmatpush1.msra.mxu0 0.0
    %96 = vmatprep.subr.mxu0 0.0
    %97 = vmatpush1.msra.mxu0 0.0
    %98 = vmatprep.subr.mxu0 0.0
    %99 = vmatpush1.msra.mxu0 0.0
    %100 = vmatprep.subr.mxu0 0.0
    %101 = vmatpush1.msra.mxu0 0.0
    %102 = vmatprep.subr.mxu0 0.0
    %103 = vmatpush1.msra.mxu0 0.0
    %104 = vmatprep.subr.mxu0 0.0
    %105 = vmatpush1.msra.mxu0 0.0
    %106 = vmatprep.subr.mxu0 0.0
    %107 = vmatpush1.msra.mxu0 0.0
    %108 = vmatprep.subr.mxu0 0.0
    %109 = vmatpush1.msra.mxu0 0.0
    %110 = vmatprep.subr.mxu0 0.0
    %111 = vmatpush1.msra.mxu0 0.0
    %112 = vmatprep.subr.mxu0 0.0
    %113 = vmatpush1.msra.mxu0 0.0
    %114 = vmatprep.subr.mxu0 0.0
    %115 = vmatpush1.msra.mxu0 0.0
    %116 = vmatprep.subr.mxu0 0.0
    %117 = vmatpush1.msra.mxu0 0.0
    %118 = vmatprep.subr.mxu0 0.0
    %119 = vmatpush1.msra.mxu0 0.0
    %120 = vmatprep.subr.mxu0 0.0
    %121 = vmatpush1.msra.mxu0 0.0
    %122 = vmatprep.subr.mxu0 0.0
    %123 = vmatpush1.msra.mxu0 0.0
    %124 = vmatprep.mubr.f32.mxu0 0.0
    %125 = vmatmul.mubr.f32.gmra.mrb[0].mxu0 %v58
    %v126 = vpop.f32.mrb[0].mxu0
    %v127 = vadd.f32 %v54, %v126
    %v128 = vpop.f32.mrb[0].mxu0
    %129 = vdwg.mxu0
    %v130 = vmax.f32 %v127, 0.0
    %v131 = vld [vmem:[%s3] sm:$0xff]
    %v132 = vld [vmem:[%s3 + $0x8] sm:$0xff]
    %v133 = vld [vmem:[%s3 + $0x10] sm:$0xff]
    %v134 = vld [vmem:[%s3 + $0x18] sm:$0xff]
    %v135 = vld [vmem:[%s3 + $0x20] sm:$0xff]
    %v136 = vld [vmem:[%s3 + $0x28] sm:$0xff]
    %v137 = vld [vmem:[%s3 + $0x30] sm:$0xff]
    %v138 = vld [vmem:[%s3 + $0x38] sm:$0xff]
    %v139 = vld [vmem:[%s3 + $0x40] sm:$0xff]
    %v140 = vld [vmem:[%s3 + $0x48] sm:$0xff]
    %v141 = vld [vmem:[%s3 + $0x50] sm:$0xff]
    %v142 = vld [vmem:[%s3 + $0x58] sm:$0xff]
    %v143 = vld [vmem:[%s3 + $0x60] sm:$0xff]
    %v144 = vld [vmem:[%s3 + $0x68] sm:$0xff]
    %v145 = vld [vmem:[%s3 + $0x70] sm:$0xff]
    %v146 = vld [vmem:[%s3 + $0x78] sm:$0xff]
    %v147 = vld [vmem:[%s4] sm:$0x1]
    %v149 = vlaneseq
    %v150 = vshrl.u32 %v149, 7
    %v151 = vsub.s32 0, %v150
    %v152 = vrot.slane %v147, %v151
    %154 = vmatprep.subr.mxu0 0.0
    %155 = vmatpush1.msra.mxu0 %v131
    %156 = vmatprep.subr.mxu0 0.0
    %157 = vmatpush1.msra.mxu0 %v132
    %158 = vmatprep.subr.mxu0 0.0
    %159 = vmatpush1.msra.mxu0 %v133
    %160 = vmatprep.subr.mxu0 0.0
    %161 = vmatpush1.msra.mxu0 %v134
    %162 = vmatprep.subr.mxu0 0.0
    %163 = vmatpush1.msra.mxu0 %v135
    %164 = vmatprep.subr.mxu0 0.0
    %165 = vmatpush1.msra.mxu0 %v136
    %166 = vmatprep.subr.mxu0 0.0
    %167 = vmatpush1.msra.mxu0 %v137
    %168 = vmatprep.subr.mxu0 0.0
    %169 = vmatpush1.msra.mxu0 %v138
    %170 = vmatprep.subr.mxu0 0.0
    %171 = vmatpush1.msra.mxu0 %v139
    %172 = vmatprep.subr.mxu0 0.0
    %173 = vmatpush1.msra.mxu0 %v140
    %174 = vmatprep.subr.mxu0 0.0
    %175 = vmatpush1.msra.mxu0 %v141
    %176 = vmatprep.subr.mxu0 0.0
    %177 = vmatpush1.msra.mxu0 %v142
    %178 = vmatprep.subr.mxu0 0.0
    %179 = vmatpush1.msra.mxu0 %v143
    %180 = vmatprep.subr.mxu0 0.0
    %181 = vmatpush1.msra.mxu0 %v144
    %182 = vmatprep.subr.mxu0 0.0
    %183 = vmatpush1.msra.mxu0 %v145
    %184 = vmatprep.subr.mxu0 0.0
    %185 = vmatpush1.msra.mxu0 %v146
    %186 = vmatprep.subr.mxu0 0.0
    %187 = vmatpush1.msra.mxu0 0.0
    %188 = vmatprep.subr.mxu0 0.0
    %189 = vmatpush1.msra.mxu0 0.0
    %190 = vmatprep.subr.mxu0 0.0
    %191 = vmatpush1.msra.mxu0 0.0
    %192 = vmatprep.subr.mxu0 0.0
    %193 = vmatpush1.msra.mxu0 0.0
    %194 = vmatprep.subr.mxu0 0.0
    %195 = vmatpush1.msra.mxu0 0.0
    %196 = vmatprep.subr.mxu0 0.0
    %197 = vmatpush1.msra.mxu0 0.0
    %198 = vmatprep.subr.mxu0 0.0
    %199 = vmatpush1.msra.mxu0 0.0
    %200 = vmatprep.subr.mxu0 0.0
    %201 = vmatpush1.msra.mxu0 0.0
    %202 = vmatprep.subr.mxu0 0.0
    %203 = vmatpush1.msra.mxu0 0.0
    %204 = vmatprep.subr.mxu0 0.0
    %205 = vmatpush1.msra.mxu0 0.0
    %206 = vmatprep.subr.mxu0 0.0
    %207 = vmatpush1.msra.mxu0 0.0
    %208 = vmatprep.subr.mxu0 0.0
    %209 = vmatpush1.msra.mxu0 0.0
    %210 = vmatprep.subr.mxu0 0.0
    %211 = vmatpush1.msra.mxu0 0.0
    %212 = vmatprep.subr.mxu0 0.0
    %213 = vmatpush1.msra.mxu0 0.0
    %214 = vmatprep.subr.mxu0 0.0
    %215 = vmatpush1.msra.mxu0 0.0
    %216 = vmatprep.subr.mxu0 0.0
    %217 = vmatpush1.msra.mxu0 0.0
    %218 = vmatprep.mubr.f32.mxu0 0.0
    %219 = vmatmul.mubr.f32.gmra.mrb[0].mxu0 %v130
    %v220 = vpop.f32.mrb[0].mxu0
    %v221 = vadd.f32 %v152, %v220
    %v222 = vpop.f32.mrb[0].mxu0
    %223 = vdwg.mxu0
    %v224 = vmax.f32 %v221, 0.0
    %v225 = vld [vmem:[#allocation2] sm:$0xff]
    %v226 = vld [vmem:[#allocation2 + $0x8] sm:$0xff]
    %v227 = vld [vmem:[#allocation2 + $0x10] sm:$0xff]
    %v228 = vld [vmem:[#allocation2 + $0x18] sm:$0xff]
    %v229 = vld [vmem:[#allocation2 + $0x20] sm:$0xff]
    %v230 = vld [vmem:[#allocation2 + $0x28] sm:$0xff]
    %v231 = vld [vmem:[#allocation2 + $0x30] sm:$0xff]
    %v232 = vld [vmem:[#allocation2 + $0x38] sm:$0xff]
    %v233 = vld [vmem:[#allocation2 + $0x40] sm:$0xff]
    %v234 = vld [vmem:[#allocation2 + $0x48] sm:$0xff]
    %v235 = vld [vmem:[#allocation2 + $0x50] sm:$0xff]
    %v236 = vld [vmem:[#allocation2 + $0x58] sm:$0xff]
    %v237 = vld [vmem:[#allocation2 + $0x60] sm:$0xff]
    %v238 = vld [vmem:[#allocation2 + $0x68] sm:$0xff]
    %v239 = vld [vmem:[#allocation2 + $0x70] sm:$0xff]
    %v240 = vld [vmem:[#allocation2 + $0x78] sm:$0xff]
    %v241 = vld [vmem:[%s6] sm:$0x1]
    %v243 = vlaneseq
    %v244 = vshrl.u32 %v243, 7
    %v245 = vsub.s32 0, %v244
    %v246 = vrot.slane %v241, %v245
    %248 = vmatprep.subr.mxu0 0.0
    %249 = vmatpush1.msra.mxu0 %v225
    %250 = vmatprep.subr.mxu0 0.0
    %251 = vmatpush1.msra.mxu0 %v226
    %252 = vmatprep.subr.mxu0 0.0
    %253 = vmatpush1.msra.mxu0 %v227
    %254 = vmatprep.subr.mxu0 0.0
    %255 = vmatpush1.msra.mxu0 %v228
    %256 = vmatprep.subr.mxu0 0.0
    %257 = vmatpush1.msra.mxu0 %v229
    %258 = vmatprep.subr.mxu0 0.0
    %259 = vmatpush1.msra.mxu0 %v230
    %260 = vmatprep.subr.mxu0 0.0
    %261 = vmatpush1.msra.mxu0 %v231
    %262 = vmatprep.subr.mxu0 0.0
    %263 = vmatpush1.msra.mxu0 %v232
    %264 = vmatprep.subr.mxu0 0.0
    %265 = vmatpush1.msra.mxu0 %v233
    %266 = vmatprep.subr.mxu0 0.0
    %267 = vmatpush1.msra.mxu0 %v234
    %268 = vmatprep.subr.mxu0 0.0
    %269 = vmatpush1.msra.mxu0 %v235
    %270 = vmatprep.subr.mxu0 0.0
    %271 = vmatpush1.msra.mxu0 %v236
    %272 = vmatprep.subr.mxu0 0.0
    %273 = vmatpush1.msra.mxu0 %v237
    %274 = vmatprep.subr.mxu0 0.0
    %275 = vmatpush1.msra.mxu0 %v238
    %276 = vmatprep.subr.mxu0 0.0
    %277 = vmatpush1.msra.mxu0 %v239
    %278 = vmatprep.subr.mxu0 0.0
    %279 = vmatpush1.msra.mxu0 %v240
    %280 = vmatprep.subr.mxu0 0.0
    %281 = vmatpush1.msra.mxu0 0.0
    %282 = vmatprep.subr.mxu0 0.0
    %283 = vmatpush1.msra.mxu0 0.0
    %284 = vmatprep.subr.mxu0 0.0
    %285 = vmatpush1.msra.mxu0 0.0
    %286 = vmatprep.subr.mxu0 0.0
    %287 = vmatpush1.msra.mxu0 0.0
    %288 = vmatprep.subr.mxu0 0.0
    %289 = vmatpush1.msra.mxu0 0.0
    %290 = vmatprep.subr.mxu0 0.0
    %291 = vmatpush1.msra.mxu0 0.0
    %292 = vmatprep.subr.mxu0 0.0
    %293 = vmatpush1.msra.mxu0 0.0
    %294 = vmatprep.subr.mxu0 0.0
    %295 = vmatpush1.msra.mxu0 0.0
    %296 = vmatprep.subr.mxu0 0.0
    %297 = vmatpush1.msra.mxu0 0.0
    %298 = vmatprep.subr.mxu0 0.0
    %299 = vmatpush1.msra.mxu0 0.0
    %300 = vmatprep.subr.mxu0 0.0
    %301 = vmatpush1.msra.mxu0 0.0
    %302 = vmatprep.subr.mxu0 0.0
    %303 = vmatpush1.msra.mxu0 0.0
    %304 = vmatprep.subr.mxu0 0.0
    %305 = vmatpush1.msra.mxu0 0.0
    %306 = vmatprep.subr.mxu0 0.0
    %307 = vmatpush1.msra.mxu0 0.0
    %308 = vmatprep.subr.mxu0 0.0
    %309 = vmatpush1.msra.mxu0 0.0
    %310 = vmatprep.subr.mxu0 0.0
    %311 = vmatpush1.msra.mxu0 0.0
    %312 = vmatprep.mubr.f32.mxu0 0.0
    %313 = vmatmul.mubr.f32.gmra.mrb[0].mxu0 %v224
    %v314 = vpop.f32.mrb[0].mxu0
    %v315 = vadd.f32 %v246, %v314
    %v316 = vpop.f32.mrb[0].mxu0
    %317 = vdwg.mxu0
    %v318 = vmax.f32 %v315, 0.0
    %v319 = vld [vmem:[%s7] sm:$0xff]
    %v320 = vld [vmem:[%s7 + $0x8] sm:$0xff]
    %v321 = vld [vmem:[%s7 + $0x10] sm:$0xff]
    %v322 = vld [vmem:[%s7 + $0x18] sm:$0xff]
    %v323 = vld [vmem:[%s7 + $0x20] sm:$0xff]
    %v324 = vld [vmem:[%s7 + $0x28] sm:$0xff]
    %v325 = vld [vmem:[%s7 + $0x30] sm:$0xff]
    %v326 = vld [vmem:[%s7 + $0x38] sm:$0xff]
    %v327 = vld [vmem:[%s7 + $0x40] sm:$0xff]
    %v328 = vld [vmem:[%s7 + $0x48] sm:$0xff]
    %v329 = vld [vmem:[%s7 + $0x50] sm:$0xff]
    %v330 = vld [vmem:[%s7 + $0x58] sm:$0xff]
    %v331 = vld [vmem:[%s7 + $0x60] sm:$0xff]
    %v332 = vld [vmem:[%s7 + $0x68] sm:$0xff]
    %v333 = vld [vmem:[%s7 + $0x70] sm:$0xff]
    %v334 = vld [vmem:[%s7 + $0x78] sm:$0xff]
    %v335 = vld [vmem:[%s8] sm:$0x1]
    %v337 = vlaneseq
    %v338 = vshrl.u32 %v337, 7
    %v339 = vsub.s32 0, %v338
    %v340 = vrot.slane %v335, %v339
    %342 = vmatprep.subr.mxu0 0.0
    %343 = vmatpush1.msra.mxu0 %v319
    %344 = vmatprep.subr.mxu0 0.0
    %345 = vmatpush1.msra.mxu0 %v320
    %346 = vmatprep.subr.mxu0 0.0
    %347 = vmatpush1.msra.mxu0 %v321
    %348 = vmatprep.subr.mxu0 0.0
    %349 = vmatpush1.msra.mxu0 %v322
    %350 = vmatprep.subr.mxu0 0.0
    %351 = vmatpush1.msra.mxu0 %v323
    %352 = vmatprep.subr.mxu0 0.0
    %353 = vmatpush1.msra.mxu0 %v324
    %354 = vmatprep.subr.mxu0 0.0
    %355 = vmatpush1.msra.mxu0 %v325
    %356 = vmatprep.subr.mxu0 0.0
    %357 = vmatpush1.msra.mxu0 %v326
    %358 = vmatprep.subr.mxu0 0.0
    %359 = vmatpush1.msra.mxu0 %v327
    %360 = vmatprep.subr.mxu0 0.0
    %361 = vmatpush1.msra.mxu0 %v328
    %362 = vmatprep.subr.mxu0 0.0
    %363 = vmatpush1.msra.mxu0 %v329
    %364 = vmatprep.subr.mxu0 0.0
    %365 = vmatpush1.msra.mxu0 %v330
    %366 = vmatprep.subr.mxu0 0.0
    %367 = vmatpush1.msra.mxu0 %v331
    %368 = vmatprep.subr.mxu0 0.0
    %369 = vmatpush1.msra.mxu0 %v332
    %370 = vmatprep.subr.mxu0 0.0
    %371 = vmatpush1.msra.mxu0 %v333
    %372 = vmatprep.subr.mxu0 0.0
    %373 = vmatpush1.msra.mxu0 %v334
    %374 = vmatprep.subr.mxu0 0.0
    %375 = vmatpush1.msra.mxu0 0.0
    %376 = vmatprep.subr.mxu0 0.0
    %377 = vmatpush1.msra.mxu0 0.0
    %378 = vmatprep.subr.mxu0 0.0
    %379 = vmatpush1.msra.mxu0 0.0
    %380 = vmatprep.subr.mxu0 0.0
    %381 = vmatpush1.msra.mxu0 0.0
    %382 = vmatprep.subr.mxu0 0.0
    %383 = vmatpush1.msra.mxu0 0.0
    %384 = vmatprep.subr.mxu0 0.0
    %385 = vmatpush1.msra.mxu0 0.0
    %386 = vmatprep.subr.mxu0 0.0
    %387 = vmatpush1.msra.mxu0 0.0
    %388 = vmatprep.subr.mxu0 0.0
    %389 = vmatpush1.msra.mxu0 0.0
    %390 = vmatprep.subr.mxu0 0.0
    %391 = vmatpush1.msra.mxu0 0.0
    %392 = vmatprep.subr.mxu0 0.0
    %393 = vmatpush1.msra.mxu0 0.0
    %394 = vmatprep.subr.mxu0 0.0
    %395 = vmatpush1.msra.mxu0 0.0
    %396 = vmatprep.subr.mxu0 0.0
    %397 = vmatpush1.msra.mxu0 0.0
    %398 = vmatprep.subr.mxu0 0.0
    %399 = vmatpush1.msra.mxu0 0.0
    %400 = vmatprep.subr.mxu0 0.0
    %401 = vmatpush1.msra.mxu0 0.0
    %402 = vmatprep.subr.mxu0 0.0
    %403 = vmatpush1.msra.mxu0 0.0
    %404 = vmatprep.subr.mxu0 0.0
    %405 = vmatpush1.msra.mxu0 0.0
    %406 = vmatprep.mubr.f32.mxu0 0.0
    %407 = vmatmul.mubr.f32.gmra.mrb[0].mxu0 %v318
    %v408 = vpop.f32.mrb[0].mxu0
    %v409 = vadd.f32 %v340, %v408
    %v410 = vpop.f32.mrb[0].mxu0
    %411 = vdwg.mxu0
    %v412 = vtanh.pop %v409
    %vm413 = vcmask 25600
    %414 = vst.msk [vmem:[#allocation5] sm:$0x3] %vm413, %v412
    // Predicated region
    $region42: #{tpu_custom_call.1} parent=1 // pred_check
      _
    $region43: #{tpu_custom_call.1} parent=1 // pred_check_branch
      %416 = sbr.rel (0) target = $region45
    $region44: #{tpu_custom_call.1} parent=1 // pred_region
      %s418 = ssub.s32 32, 32
      %419 = vsyncadd [#allocation4], %s418
      %s421 = sshll.u32 [#allocation5], 4
      %s422 = int_to_ptr.vmem [resolvable:$true] %s421
      %424 = dma.vmem_to_hbm [thread:$0]  %s422, 32, %s9, [#allocation4]
    $region45: #{tpu_custom_call.1} parent=1 // pred_fallthru
      _
    // Predicated region
    $region46: #{tpu_custom_call.1} parent=1 // pred_check
      _
    $region47: #{tpu_custom_call.1} parent=1 // pred_check_branch
      %426 = sbr.rel (0) target = $region49
    $region48: #{tpu_custom_call.1} parent=1 // pred_region
      %427 = dma.done [#allocation4], 32
    $region49: #{tpu_custom_call.1} parent=1 // pred_fallthru
      _
    %428 = vsyncpa [#allocation3], 1
    %429 = vsyncpa [#allocation4], 1

</llo_original>
